<compile_context>
chip_gen: v5e
topology: v5e:2x2
jax: 0.10.0
libtpu: 0.0.40
codegen_flags: <defaults>
</compile_context>

<pallas_src>
import jax
import jax.numpy as jnp
from jax.experimental import pallas as pl
from jax.experimental.pallas import tpu as pltpu


def _round_up(x, m):
    return ((x + m - 1) // m) * m


def _cdiv(a, b):
    return (a + b - 1) // b


def _gelu_in_bf16():
    # bf16 VPU/EUP paths exist on v6e / v7x; keep f32 GELU on v5e and older.
    try:
        kind = jax.devices()[0].device_kind.lower()
    except Exception:
        return False
    return any(t in kind for t in ("v6", "v7", "7x"))


def _estimate_vmem_bytes(tile_m, h_pad, tf, c_pad, chunked):
    """Rough per-step VMEM footprint (buffers + scratch + temporaries)."""
    wbuf = 2 if chunked else 1
    b = 0
    b += 2 * tile_m * h_pad * 2                      # emb tile (bf16, 2 bufs)
    b += 2 * tile_m * c_pad * 4                      # out tile (f32, 2 bufs)
    b += 2 * h_pad * 4                               # ln gamma/beta (1 buf)
    b += wbuf * (h_pad * tf * 2 + tf * 4)            # w1 (+ b1) chunk
    b += wbuf * (tf * h_pad * 2)                     # w2 chunk
    b += h_pad * 4 + h_pad * c_pad * 2 + c_pad * 4   # b2, wc, bc (1 buf)
    b += tile_m * h_pad * (4 + 2)                    # acc (f32) + xn (bf16) scratch
    b += 2 * tile_m * tf * 4                         # [tile_m, tf] temporaries
    b += 2 * tile_m * h_pad * 4                      # misc f32 temporaries
    return b


def _choose_f_chunk(tile_m, h_pad, f_pad, c_pad, budget_bytes=40 << 20):
    """Largest F chunk (divisor of f_pad, multiple of 128) fitting the budget."""
    nf = f_pad // 128
    for n in range(1, nf + 1):
        if nf % n:
            continue
        tf = f_pad // n
        if _estimate_vmem_bytes(tile_m, h_pad, tf, c_pad, n > 1) <= budget_bytes:
            return tf, n
    return 128, nf


# ---------------------------------------------------------------------------
# Pallas kernel: fused per-token backbone block + classifier on a masked tile.
# grid = (token tiles [parallel], F chunks [arbitrary, accumulated]).
# ---------------------------------------------------------------------------
def _make_kernel(h_true, gelu_bf16):
    eps = 1e-5
    inv_h = 1.0 / float(h_true)

    def kernel(emb_ref, gamma_ref, beta_ref, w1_ref, b1_ref,
               w2_ref, b2_ref, wc_ref, bc_ref, out_ref, acc_ref, xn_ref):
        k = pl.program_id(1)

        @pl.when(k == 0)
        def _init():
            x = emb_ref[...].astype(jnp.float32)           # [tile_m, H_pad]
            # LN statistics over the TRUE H lanes only (pad lanes are zero).
            mu = jnp.sum(x, axis=-1, keepdims=True) * inv_h
            lane = jax.lax.broadcasted_iota(jnp.int32, x.shape, 1)
            d = jnp.where(lane < h_true, x - mu, 0.0)      # two-pass variance
            var = jnp.sum(d * d, axis=-1, keepdims=True) * inv_h
            xn = d * jax.lax.rsqrt(var + eps)
            xn = xn * gamma_ref[...] + beta_ref[...]       # pad lanes stay 0
            xn_ref[...] = xn.astype(jnp.bfloat16)
            acc_ref[...] = jnp.zeros_like(acc_ref)

        # MLP F-chunk: bf16 MXU operands, f32 accumulation.
        h = jnp.dot(xn_ref[...], w1_ref[...],
                    preferred_element_type=jnp.float32) + b1_ref[...]
        if gelu_bf16:
            h = jax.nn.gelu(h.astype(jnp.bfloat16), approximate=True)
        else:
            h = jax.nn.gelu(h, approximate=True).astype(jnp.bfloat16)
        acc_ref[...] += jnp.dot(h, w2_ref[...], preferred_element_type=jnp.float32)

        @pl.when(k == pl.num_programs(1) - 1)
        def _finalize():
            x = emb_ref[...].astype(jnp.float32)
            hidden = x + acc_ref[...] + b2_ref[...]        # residual (f32)
            # classifier: lane-dense padded output -> unmasked vst
            out_ref[...] = (jnp.dot(hidden.astype(jnp.bfloat16), wc_ref[...],
                                    preferred_element_type=jnp.float32)
                            + bc_ref[...])

    return kernel


# ---------------------------------------------------------------------------
# One-time parameter preparation (hoisted out of the forward pass):
# bf16 cast + zero-pad H/F/C up to 128-lane multiples.
# ---------------------------------------------------------------------------
def prepare_params(params):
    vocab, H = params["emb_table"].shape
    F = params["w1"].shape[1]
    C = params["wc"].shape[1]
    H_pad = _round_up(H, 128)
    F_pad = _round_up(F, 128)
    C_pad = _round_up(C, 128)

    def pad2(a, rows, cols, dtype):
        out = jnp.zeros((rows, cols), dtype)
        return out.at[:a.shape[0], :a.shape[1]].set(a.astype(dtype))

    return {
        "H": H, "H_pad": H_pad, "F_pad": F_pad, "C": C, "C_pad": C_pad,
        "emb_table": pad2(params["emb_table"], vocab, H_pad, jnp.bfloat16),
        "ln_gamma":  pad2(params["ln_gamma"], 1, H_pad, jnp.float32),
        "ln_beta":   pad2(params["ln_beta"], 1, H_pad, jnp.float32),
        "w1": pad2(params["w1"], H_pad, F_pad, jnp.bfloat16),
        "b1": pad2(params["b1"], 1, F_pad, jnp.float32),
        "w2": pad2(params["w2"], F_pad, H_pad, jnp.bfloat16),
        "b2": pad2(params["b2"], 1, H_pad, jnp.float32),
        "wc": pad2(params["wc"], H_pad, C_pad, jnp.bfloat16),
        "bc": pad2(params["bc"], 1, C_pad, jnp.float32),
    }


# ---------------------------------------------------------------------------
# Wrapper: gather masked-token embeddings (bf16), call the tiled kernel.
# ---------------------------------------------------------------------------
def swa_support_forward(prepared, input_ids, is_masked, num_masked):
    h_true, h_pad = prepared["H"], prepared["H_pad"]
    f_pad = prepared["F_pad"]
    c_true, c_pad = prepared["C"], prepared["C_pad"]

    m = max(int(num_masked), 1)
    # >= 2 token tiles once M is non-trivial (v7x megacore), cap at 512 rows.
    tile_m = min(512, _round_up(_cdiv(m, 2), 16))
    m_pad = _round_up(m, tile_m)

    tf, f_chunks = _choose_f_chunk(tile_m, h_pad, f_pad, c_pad)
    chunked = f_chunks > 1

    # glue (XLA): True positions -> token ids -> [m_pad, h_pad] bf16 embeddings.
    # Only the masked rows are ever materialized / DMA'd (no [T, H] tensor).
    # NOTE: nonzero(..., size=m_pad, fill_value=0) pads missing positions with
    # index 0, so if fewer than num_masked positions are True we emit logits
    # for token-0 duplicates (PyTorch would return fewer rows).
    flat_idx = jnp.nonzero(is_masked.reshape(-1), size=m_pad, fill_value=0)[0]
    tok_ids = input_ids.reshape(-1)[flat_idx]                 # [m_pad]
    emb = prepared["emb_table"][tok_ids]                      # [m_pad, h_pad] bf16

    def rspec(shape):  # constant index_map -> resident, single-buffered
        return pl.BlockSpec(shape, lambda i, k: (0, 0), pipeline_mode=pl.Buffered(1))

    def wspec(shape, imap):  # F-chunked weights: double-buffer only if chunked
        if chunked:
            return pl.BlockSpec(shape, imap)
        return pl.BlockSpec(shape, imap, pipeline_mode=pl.Buffered(1))

    est = _estimate_vmem_bytes(tile_m, h_pad, tf, c_pad, chunked)
    vmem_limit = int(min(60 << 20, max(32 << 20, 2 * est)))

    kernel = _make_kernel(h_true, _gelu_in_bf16())

    out_padded = pl.pallas_call(
        kernel,
        out_shape=jax.ShapeDtypeStruct((m_pad, c_pad), jnp.float32),
        grid_spec=pltpu.PrefetchScalarGridSpec(
            num_scalar_prefetch=0,
            grid=(m_pad // tile_m, f_chunks),
            in_specs=[
                pl.BlockSpec((tile_m, h_pad), lambda i, k: (i, 0)),   # emb tile
                rspec((1, h_pad)), rspec((1, h_pad)),                 # ln gamma/beta
                wspec((h_pad, tf), lambda i, k: (0, k)),              # w1 chunk
                wspec((1, tf),     lambda i, k: (0, k)),              # b1 chunk
                wspec((tf, h_pad), lambda i, k: (k, 0)),              # w2 chunk
                rspec((1, h_pad)),                                    # b2
                rspec((h_pad, c_pad)), rspec((1, c_pad)),             # wc, bc
            ],
            out_specs=pl.BlockSpec((tile_m, c_pad), lambda i, k: (i, 0)),
            scratch_shapes=[
                pltpu.VMEM((tile_m, h_pad), jnp.float32),   # MLP accumulator
                pltpu.VMEM((tile_m, h_pad), jnp.bfloat16),  # cached LN output
            ],
        ),
        compiler_params=pltpu.CompilerParams(
            dimension_semantics=("parallel", "arbitrary"),
            vmem_limit_bytes=vmem_limit,
        ),
    )(emb, prepared["ln_gamma"], prepared["ln_beta"],
      prepared["w1"], prepared["b1"], prepared["w2"], prepared["b2"],
      prepared["wc"], prepared["bc"])

    return out_padded[:num_masked, :c_true]


# ---------------------------------------------------------------------------
# Pure-JAX f32 reference (full [T, H] hidden state + boolean-index select)
# ---------------------------------------------------------------------------
def swa_support_reference(params, input_ids, is_masked, num_masked):
    emb = params["emb_table"][input_ids.reshape(-1)]              # [T, H]
    mu = jnp.mean(emb, axis=-1, keepdims=True)
    var = jnp.mean((emb - mu) ** 2, axis=-1, keepdims=True)
    xn = (emb - mu) * jax.lax.rsqrt(var + 1e-5)
    xn = xn * params["ln_gamma"] + params["ln_beta"]
    h = jax.nn.gelu(xn @ params["w1"] + params["b1"], approximate=True)
    h = h @ params["w2"] + params["b2"]
    hidden = emb + h                                              # [T, H]
    idx = jnp.nonzero(is_masked.reshape(-1), size=num_masked)[0]
    masked = hidden[idx]                                          # [M, H]
    return masked @ params["wc"] + params["bc"]


# ---------------------------------------------------------------------------
# Deterministic parameter init + demo
# ---------------------------------------------------------------------------
def init_params(key, vocab, H, F, C):
    ks = jax.random.split(key, 5)
    scale = 0.02
    return {
        "emb_table": scale * jax.random.normal(ks[0], (vocab, H), jnp.float32),
        "ln_gamma":  jnp.ones((1, H), jnp.float32),
        "ln_beta":   jnp.zeros((1, H), jnp.float32),
        "w1": scale * jax.random.normal(ks[1], (H, F), jnp.float32),
        "b1": jnp.zeros((1, F), jnp.float32),
        "w2": scale * jax.random.normal(ks[2], (F, H), jnp.float32),
        "b2": jnp.zeros((1, H), jnp.float32),
        "wc": scale * jax.random.normal(ks[3], (H, C), jnp.float32),
        "bc": jnp.zeros((1, C), jnp.float32),
    }


if __name__ == "__main__":
    B, S, vocab, H, F, C = 2, 8, 64, 32, 64, 5

    key = jax.random.PRNGKey(0)
    k_par, k_ids = jax.random.split(key)
    params = init_params(k_par, vocab, H, F, C)
    prepared = prepare_params(params)    # one-time bf16 cast + 128-lane padding

    input_ids = jax.random.randint(k_ids, (B, S), 0, vocab, dtype=jnp.int32)

    # fixed number of masked positions (PyTorch boolean indexing -> [M, H])
    is_masked = jnp.zeros((B, S), dtype=jnp.bool_)
    is_masked = is_masked.at[0, 1].set(True)
    is_masked = is_masked.at[0, 5].set(True)
    is_masked = is_masked.at[1, 2].set(True)
    is_masked = is_masked.at[1, 7].set(True)
    M = 4

    logits = swa_support_forward(prepared, input_ids, is_masked, M)
    logits = jax.block_until_ready(logits)

    ref = swa_support_reference(params, input_ids, is_masked, M)
    assert logits.shape == (M, C)
    max_diff = jnp.max(jnp.abs(logits - ref))
    # bf16 embeddings / MXU operands vs f32 reference -> looser tolerance
    assert jnp.allclose(logits, ref, atol=5e-3, rtol=5e-2), (
        f"mismatch: max abs diff {max_diff}")

    print("KERNEL_OK")
</pallas_src>

<mosaic_0001>
module attributes {stable_mosaic.version = 11 : i64} {
  func.func @kernel(%arg0: i32, %arg1: i32, %arg2: memref<16x128xbf16, #tpu.memory_space<vmem>>, %arg3: memref<1x128xf32, #tpu.memory_space<vmem>>, %arg4: memref<1x128xf32, #tpu.memory_space<vmem>>, %arg5: memref<128x128xbf16, #tpu.memory_space<vmem>>, %arg6: memref<1x128xf32, #tpu.memory_space<vmem>>, %arg7: memref<128x128xbf16, #tpu.memory_space<vmem>>, %arg8: memref<1x128xf32, #tpu.memory_space<vmem>>, %arg9: memref<128x128xbf16, #tpu.memory_space<vmem>>, %arg10: memref<1x128xf32, #tpu.memory_space<vmem>>, %arg11: memref<16x128xf32, #tpu.memory_space<vmem>>, %arg12: memref<16x128xf32, #tpu.memory_space<vmem>>, %arg13: memref<16x128xbf16, #tpu.memory_space<vmem>>) attributes {dimension_semantics = [#tpu.dimension_semantics<parallel>, #tpu.dimension_semantics<arbitrary>], iteration_bounds = array<i64: 1, 1>, scalar_prefetch = 0 : i64, scratch_operands = 2 : i64, tpu.core_type = #tpu.core_type<tc>, window_params = [{transform_indices = @transform_0, window_bounds = array<i64: 16, 128>}, {pipeline_mode = #tpu.pipeline_mode<synchronous>, transform_indices = @transform_1, window_bounds = array<i64: 1, 128>}, {pipeline_mode = #tpu.pipeline_mode<synchronous>, transform_indices = @transform_2, window_bounds = array<i64: 1, 128>}, {pipeline_mode = #tpu.pipeline_mode<synchronous>, transform_indices = @transform_3, window_bounds = array<i64: 128, 128>}, {pipeline_mode = #tpu.pipeline_mode<synchronous>, transform_indices = @transform_4, window_bounds = array<i64: 1, 128>}, {pipeline_mode = #tpu.pipeline_mode<synchronous>, transform_indices = @transform_5, window_bounds = array<i64: 128, 128>}, {pipeline_mode = #tpu.pipeline_mode<synchronous>, transform_indices = @transform_6, window_bounds = array<i64: 1, 128>}, {pipeline_mode = #tpu.pipeline_mode<synchronous>, transform_indices = @transform_7, window_bounds = array<i64: 128, 128>}, {pipeline_mode = #tpu.pipeline_mode<synchronous>, transform_indices = @transform_8, window_bounds = array<i64: 1, 128>}, {transform_indices = @transform_9, window_bounds = array<i64: 16, 128>}]} {
    %c0_i32 = arith.constant 0 : i32
    %0 = arith.cmpi eq, %arg1, %c0_i32 : i32
    %1 = arith.extui %0 : i1 to i32
    %c0_i32_0 = arith.constant 0 : i32
    %2 = arith.cmpi ne, %1, %c0_i32_0 : i32
    scf.if %2 {
      %c0_19 = arith.constant 0 : index
      %c0_20 = arith.constant 0 : index
      %31 = vector.load %arg2[%c0_19, %c0_20] : memref<16x128xbf16, #tpu.memory_space<vmem>>, vector<16x128xbf16>
      %32 = arith.extf %31 : vector<16x128xbf16> to vector<16x128xf32>
      %cst_21 = arith.constant dense<0.000000e+00> : vector<16xf32>
      %33 = vector.multi_reduction <add>, %32, %cst_21 [1] : vector<16x128xf32> to vector<16xf32>
      %34 = vector.shape_cast %33 : vector<16xf32> to vector<16x1xf32>
      %cst_22 = arith.constant 3.125000e-02 : f32
      %35 = vector.broadcast %cst_22 : f32 to vector<16x1xf32>
      %36 = arith.mulf %34, %35 : vector<16x1xf32>
      %37 = tpu.iota {dimensions = array<i32: 1>} : vector<16x128xi32>
      %c32_i32 = arith.constant 32 : i32
      %38 = vector.broadcast %c32_i32 : i32 to vector<16x128xi32>
      %39 = arith.cmpi slt, %37, %38 : vector<16x128xi32>
      %40 = vector.broadcast %36 : vector<16x1xf32> to vector<16x128xf32>
      %41 = arith.subf %32, %40 : vector<16x128xf32>
      %cst_23 = arith.constant 0.000000e+00 : f32
      %42 = vector.broadcast %cst_23 : f32 to vector<16x128xf32>
      %43 = arith.select %39, %41, %42 : vector<16x128xi1>, vector<16x128xf32>
      %44 = arith.mulf %43, %43 : vector<16x128xf32>
      %cst_24 = arith.constant dense<0.000000e+00> : vector<16xf32>
      %45 = vector.multi_reduction <add>, %44, %cst_24 [1] : vector<16x128xf32> to vector<16xf32>
      %46 = vector.shape_cast %45 : vector<16xf32> to vector<16x1xf32>
      %cst_25 = arith.constant 3.125000e-02 : f32
      %47 = vector.broadcast %cst_25 : f32 to vector<16x1xf32>
      %48 = arith.mulf %46, %47 : vector<16x1xf32>
      %cst_26 = arith.constant 9.99999974E-6 : f32
      %49 = vector.broadcast %cst_26 : f32 to vector<16x1xf32>
      %50 = arith.addf %48, %49 : vector<16x1xf32>
      %51 = math.rsqrt %50 : vector<16x1xf32>
      %52 = vector.broadcast %51 : vector<16x1xf32> to vector<16x128xf32>
      %53 = arith.mulf %43, %52 : vector<16x128xf32>
      %c0_27 = arith.constant 0 : index
      %c0_28 = arith.constant 0 : index
      %54 = vector.load %arg3[%c0_27, %c0_28] : memref<1x128xf32, #tpu.memory_space<vmem>>, vector<1x128xf32>
      %55 = vector.broadcast %54 : vector<1x128xf32> to vector<16x128xf32>
      %56 = arith.mulf %53, %55 : vector<16x128xf32>
      %c0_29 = arith.constant 0 : index
      %c0_30 = arith.constant 0 : index
      %57 = vector.load %arg4[%c0_29, %c0_30] : memref<1x128xf32, #tpu.memory_space<vmem>>, vector<1x128xf32>
      %58 = vector.broadcast %57 : vector<1x128xf32> to vector<16x128xf32>
      %59 = arith.addf %56, %58 : vector<16x128xf32>
      %60 = arith.truncf %59 : vector<16x128xf32> to vector<16x128xbf16>
      %c0_31 = arith.constant 0 : index
      %c0_32 = arith.constant 0 : index
      %61 = vector.load %arg13[%c0_31, %c0_32] : memref<16x128xbf16, #tpu.memory_space<vmem>>, vector<16x128xbf16>
      tpu.vector_store %arg13[%c0_31, %c0_32], %60 {strides = array<i32>} : memref<16x128xbf16, #tpu.memory_space<vmem>>, vector<16x128xbf16>,
      %cst_33 = arith.constant 0.000000e+00 : f32
      %62 = vector.broadcast %cst_33 : f32 to vector<16x128xf32>
      %c0_34 = arith.constant 0 : index
      %c0_35 = arith.constant 0 : index
      %63 = vector.load %arg12[%c0_34, %c0_35] : memref<16x128xf32, #tpu.memory_space<vmem>>, vector<16x128xf32>
      tpu.vector_store %arg12[%c0_34, %c0_35], %62 {strides = array<i32>} : memref<16x128xf32, #tpu.memory_space<vmem>>, vector<16x128xf32>,
    } else {
    }
    %c0 = arith.constant 0 : index
    %c0_1 = arith.constant 0 : index
    %3 = vector.load %arg13[%c0, %c0_1] : memref<16x128xbf16, #tpu.memory_space<vmem>>, vector<16x128xbf16>
    %c0_2 = arith.constant 0 : index
    %c0_3 = arith.constant 0 : index
    %4 = vector.load %arg5[%c0_2, %c0_3] : memref<128x128xbf16, #tpu.memory_space<vmem>>, vector<128x128xbf16>
    %cst = arith.constant dense<0.000000e+00> : vector<16x128xf32>
    %5 = tpu.matmul %3, %4, %cst {dimension_numbers = #tpu.dot_dimension_numbers<[1], [0], [0], [1], [0, 0, 1, 1], [], []>} : vector<16x128xbf16>, vector<128x128xbf16>, vector<16x128xf32> -> vector<16x128xf32>
    %c0_4 = arith.constant 0 : index
    %c0_5 = arith.constant 0 : index
    %6 = vector.load %arg6[%c0_4, %c0_5] : memref<1x128xf32, #tpu.memory_space<vmem>>, vector<1x128xf32>
    %7 = vector.broadcast %6 : vector<1x128xf32> to vector<16x128xf32>
    %8 = arith.addf %5, %7 : vector<16x128xf32>
    %9 = arith.mulf %8, %8 : vector<16x128xf32>
    %10 = arith.mulf %8, %9 : vector<16x128xf32>
    %cst_6 = arith.constant 4.471500e-02 : f32
    %11 = vector.broadcast %cst_6 : f32 to vector<16x128xf32>
    %12 = arith.mulf %11, %10 : vector<16x128xf32>
    %13 = arith.addf %8, %12 : vector<16x128xf32>
    %cst_7 = arith.constant 0.797884583 : f32
    %14 = vector.broadcast %cst_7 : f32 to vector<16x128xf32>
    %15 = arith.mulf %14, %13 : vector<16x128xf32>
    %16 = math.tanh %15 : vector<16x128xf32>
    %cst_8 = arith.constant 1.000000e+00 : f32
    %17 = vector.broadcast %cst_8 : f32 to vector<16x128xf32>
    %18 = arith.addf %17, %16 : vector<16x128xf32>
    %cst_9 = arith.constant 5.000000e-01 : f32
    %19 = vector.broadcast %cst_9 : f32 to vector<16x128xf32>
    %20 = arith.mulf %19, %18 : vector<16x128xf32>
    %21 = arith.mulf %8, %20 : vector<16x128xf32>
    %22 = arith.truncf %21 : vector<16x128xf32> to vector<16x128xbf16>
    %c0_10 = arith.constant 0 : index
    %c0_11 = arith.constant 0 : index
    %23 = vector.load %arg12[%c0_10, %c0_11] : memref<16x128xf32, #tpu.memory_space<vmem>>, vector<16x128xf32>
    %c0_12 = arith.constant 0 : index
    %c0_13 = arith.constant 0 : index
    %24 = vector.load %arg7[%c0_12, %c0_13] : memref<128x128xbf16, #tpu.memory_space<vmem>>, vector<128x128xbf16>
    %cst_14 = arith.constant dense<0.000000e+00> : vector<16x128xf32>
    %25 = tpu.matmul %22, %24, %cst_14 {dimension_numbers = #tpu.dot_dimension_numbers<[1], [0], [0], [1], [0, 0, 1, 1], [], []>} : vector<16x128xbf16>, vector<128x128xbf16>, vector<16x128xf32> -> vector<16x128xf32>
    %26 = arith.addf %23, %25 : vector<16x128xf32>
    %c0_15 = arith.constant 0 : index
    %c0_16 = arith.constant 0 : index
    %27 = vector.load %arg12[%c0_15, %c0_16] : memref<16x128xf32, #tpu.memory_space<vmem>>, vector<16x128xf32>
    tpu.vector_store %arg12[%c0_15, %c0_16], %26 {strides = array<i32>} : memref<16x128xf32, #tpu.memory_space<vmem>>, vector<16x128xf32>,
    %c0_i32_17 = arith.constant 0 : i32
    %28 = arith.cmpi eq, %arg1, %c0_i32_17 : i32
    %29 = arith.extui %28 : i1 to i32
    %c0_i32_18 = arith.constant 0 : i32
    %30 = arith.cmpi ne, %29, %c0_i32_18 : i32
    scf.if %30 {
      %c0_19 = arith.constant 0 : index
      %c0_20 = arith.constant 0 : index
      %31 = vector.load %arg2[%c0_19, %c0_20] : memref<16x128xbf16, #tpu.memory_space<vmem>>, vector<16x128xbf16>
      %32 = arith.extf %31 : vector<16x128xbf16> to vector<16x128xf32>
      %c0_21 = arith.constant 0 : index
      %c0_22 = arith.constant 0 : index
      %33 = vector.load %arg12[%c0_21, %c0_22] : memref<16x128xf32, #tpu.memory_space<vmem>>, vector<16x128xf32>
      %34 = arith.addf %32, %33 : vector<16x128xf32>
      %c0_23 = arith.constant 0 : index
      %c0_24 = arith.constant 0 : index
      %35 = vector.load %arg8[%c0_23, %c0_24] : memref<1x128xf32, #tpu.memory_space<vmem>>, vector<1x128xf32>
      %36 = vector.broadcast %35 : vector<1x128xf32> to vector<16x128xf32>
      %37 = arith.addf %34, %36 : vector<16x128xf32>
      %38 = arith.truncf %37 : vector<16x128xf32> to vector<16x128xbf16>
      %c0_25 = arith.constant 0 : index
      %c0_26 = arith.constant 0 : index
      %39 = vector.load %arg9[%c0_25, %c0_26] : memref<128x128xbf16, #tpu.memory_space<vmem>>, vector<128x128xbf16>
      %cst_27 = arith.constant dense<0.000000e+00> : vector<16x128xf32>
      %40 = tpu.matmul %38, %39, %cst_27 {dimension_numbers = #tpu.dot_dimension_numbers<[1], [0], [0], [1], [0, 0, 1, 1], [], []>} : vector<16x128xbf16>, vector<128x128xbf16>, vector<16x128xf32> -> vector<16x128xf32>
      %c0_28 = arith.constant 0 : index
      %c0_29 = arith.constant 0 : index
      %41 = vector.load %arg10[%c0_28, %c0_29] : memref<1x128xf32, #tpu.memory_space<vmem>>, vector<1x128xf32>
      %42 = vector.broadcast %41 : vector<1x128xf32> to vector<16x128xf32>
      %43 = arith.addf %40, %42 : vector<16x128xf32>
      %c0_30 = arith.constant 0 : index
      %c0_31 = arith.constant 0 : index
      %44 = vector.load %arg11[%c0_30, %c0_31] : memref<16x128xf32, #tpu.memory_space<vmem>>, vector<16x128xf32>
      tpu.vector_store %arg11[%c0_30, %c0_31], %43 {strides = array<i32>} : memref<16x128xf32, #tpu.memory_space<vmem>>, vector<16x128xf32>,
    } else {
    }
    return
  }
  func.func @transform_0(%arg0: i32, %arg1: i32) -> (i32, i32) {
    %c0_i32 = arith.constant 0 : i32
    %c0_i32_0 = arith.constant 0 : i32
    return %arg0, %c0_i32 : i32, i32
  }
  func.func @transform_1(%arg0: i32, %arg1: i32) -> (i32, i32) {
    %c0_i32 = arith.constant 0 : i32
    %c0_i32_0 = arith.constant 0 : i32
    %c0_i32_1 = arith.constant 0 : i32
    return %c0_i32, %c0_i32_0 : i32, i32
  }
  func.func @transform_2(%arg0: i32, %arg1: i32) -> (i32, i32) {
    %c0_i32 = arith.constant 0 : i32
    %c0_i32_0 = arith.constant 0 : i32
    %c0_i32_1 = arith.constant 0 : i32
    return %c0_i32, %c0_i32_0 : i32, i32
  }
  func.func @transform_3(%arg0: i32, %arg1: i32) -> (i32, i32) {
    %c0_i32 = arith.constant 0 : i32
    %c0_i32_0 = arith.constant 0 : i32
    return %c0_i32, %arg1 : i32, i32
  }
  func.func @transform_4(%arg0: i32, %arg1: i32) -> (i32, i32) {
    %c0_i32 = arith.constant 0 : i32
    %c0_i32_0 = arith.constant 0 : i32
    return %c0_i32, %arg1 : i32, i32
  }
  func.func @transform_5(%arg0: i32, %arg1: i32) -> (i32, i32) {
    %c0_i32 = arith.constant 0 : i32
    %c0_i32_0 = arith.constant 0 : i32
    return %arg1, %c0_i32 : i32, i32
  }
  func.func @transform_6(%arg0: i32, %arg1: i32) -> (i32, i32) {
    %c0_i32 = arith.constant 0 : i32
    %c0_i32_0 = arith.constant 0 : i32
    %c0_i32_1 = arith.constant 0 : i32
    return %c0_i32, %c0_i32_0 : i32, i32
  }
  func.func @transform_7(%arg0: i32, %arg1: i32) -> (i32, i32) {
    %c0_i32 = arith.constant 0 : i32
    %c0_i32_0 = arith.constant 0 : i32
    %c0_i32_1 = arith.constant 0 : i32
    return %c0_i32, %c0_i32_0 : i32, i32
  }
  func.func @transform_8(%arg0: i32, %arg1: i32) -> (i32, i32) {
    %c0_i32 = arith.constant 0 : i32
    %c0_i32_0 = arith.constant 0 : i32
    %c0_i32_1 = arith.constant 0 : i32
    return %c0_i32, %c0_i32_0 : i32, i32
  }
  func.func @transform_9(%arg0: i32, %arg1: i32) -> (i32, i32) {
    %c0_i32 = arith.constant 0 : i32
    %c0_i32_0 = arith.constant 0 : i32
    return %arg0, %c0_i32 : i32, i32
  }
}

</mosaic_0001>

<llo_original>
// kernel: tpu_custom_call.1
$region0: #{tpu_custom_call.1}
  #allocation0 [shape = 'u32[]', space=smem, size = 0x4, offset = 0x4, fixed_abs, tag = 'smem constant byte address 0x4 - core index']
  #allocation1 [shape = 'u32[72,128]{1,0:T(1,128)}', space=vmem, size = 0x9000, scoped, tag = 'internal scratch']
  #allocation2 [shape = 'f32[16,128]{1,0:T(8,128)}', space=vmem, size = 0x2000, scoped, tag = 'scratch operand']
  #allocation3 [shape = 'bf16[16,128]{1,0:T(8,128)(2,1)}', space=vmem, size = 0x1000, scoped, tag = 'scratch operand']
  %s0 = inlined_call_operand.hbm [shape: bf16[16,128], index: 0, kind: input, shape index: {}]
  %s1 = inlined_call_operand.hbm [shape: f32[1,128], index: 1, kind: input, shape index: {}]
  %s2 = inlined_call_operand.vmem [shape: f32[1,128], index: 2, kind: input, shape index: {}]
  %s3 = inlined_call_operand.hbm [shape: bf16[128,128], index: 3, kind: input, shape index: {}]
  %s4 = inlined_call_operand.vmem [shape: f32[1,128], index: 4, kind: input, shape index: {}]
  %s5 = inlined_call_operand.hbm [shape: bf16[128,128], index: 5, kind: input, shape index: {}]
  %s6 = inlined_call_operand.vmem [shape: f32[1,128], index: 6, kind: input, shape index: {}]
  %s7 = inlined_call_operand.hbm [shape: bf16[128,128], index: 7, kind: input, shape index: {}]
  %s8 = inlined_call_operand.vmem [shape: f32[1,128], index: 8, kind: input, shape index: {}]
  %s9 = inlined_call_operand.hbm [shape: f32[16,128], index: 9, kind: output, shape index: {}]
  %s10 = sld [smem:[#allocation0]]
  $region74: #{tpu_custom_call.1} parent=0
    _
  %s12 = ssub.s32 1, %s10
  %s13 = scalar_select 0, %s12, %s10
  $region1: #{tpu_custom_call.1} parent=0
    #allocation4 [shape = 'u8[4096]{0}', space=vmem, size = 0x1000, scoped, tag = 'input window, operand 0, single buffered']
    #allocation5 [shape = 's32[1]{0}', space=sflag, size = 0x4, scoped, tag = 'scoped memory for tpu_custom_call.1']
    #allocation6 [shape = 's32[1]{0}', space=sflag, size = 0x4, scoped, tag = 'scoped memory for tpu_custom_call.1']
    #allocation7 [shape = 'u8[512]{0}', space=vmem, size = 0x400, scoped, tag = 'input window, operand 1, single buffered']
    #allocation8 [shape = 's32[1]{0}', space=sflag, size = 0x4, scoped, tag = 'scoped memory for tpu_custom_call.1']
    #allocation9 [shape = 'u8[32768]{0}', space=vmem, size = 0x8000, scoped, tag = 'input window, operand 3, single buffered']
    #allocation10 [shape = 'u8[32768]{0}', space=vmem, size = 0x8000, scoped, tag = 'input window, operand 5, single buffered']
    #allocation11 [shape = 's32[1]{0}', space=sflag, size = 0x4, scoped, tag = 'scoped memory for tpu_custom_call.1']
    #allocation12 [shape = 'u8[32768]{0}', space=vmem, size = 0x8000, scoped, tag = 'input window, operand 7, single buffered']
    #allocation13 [shape = 'u8[8192]{0}', space=vmem, size = 0x2000, scoped, tag = 'output window, operand 0, single buffered']
    %14 = vsyncpa [#allocation5], 0
    %15 = vsyncpa [#allocation8], 0
    %16 = vsyncpa [#allocation11], 0
    %17 = vsyncpa [#allocation6], 0
    // Predicated region
    $region2: #{tpu_custom_call.1} parent=1 // pred_check
      _
    $region3: #{tpu_custom_call.1} parent=1 // pred_check_branch
      %19 = sbr.rel (0) target = $region5
    $region4: #{tpu_custom_call.1} parent=1 // pred_region
      %21 = vsyncadd [#allocation5], 0
      %s22 = sshll.u32 %s0, 4
      %s23 = int_to_ptr.hbm [resolvable:$true] %s22
      %s24 = sshll.u32 [#allocation4], 4
      %s25 = int_to_ptr.vmem [resolvable:$true] %s24
      %30 = dma.hbm_to_vmem [thread:$0]  %s23, 128, %s25, [#allocation5], 64, 64, 4
    $region5: #{tpu_custom_call.1} parent=1 // pred_fallthru
      _
    // Predicated region
    $region6: #{tpu_custom_call.1} parent=1 // pred_check
      _
    $region7: #{tpu_custom_call.1} parent=1 // pred_check_branch
      %32 = sbr.rel (0) target = $region9
    $region8: #{tpu_custom_call.1} parent=1 // pred_region
      %34 = vsyncadd [#allocation8], 0
      %s36 = sshll.u32 %s1, 4
      %s37 = int_to_ptr.hbm [resolvable:$true] %s36
      %s38 = sshll.u32 [#allocation7], 4
      %s39 = int_to_ptr.vmem [resolvable:$true] %s38
      %41 = dma.hbm_to_vmem [thread:$0]  %s37, 16, %s39, [#allocation8]
    $region9: #{tpu_custom_call.1} parent=1 // pred_fallthru
      _
    // Predicated region
    $region10: #{tpu_custom_call.1} parent=1 // pred_check
      _
    $region11: #{tpu_custom_call.1} parent=1 // pred_check_branch
      %43 = sbr.rel (0) target = $region13
    $region12: #{tpu_custom_call.1} parent=1 // pred_region
      _
    $region13: #{tpu_custom_call.1} parent=1 // pred_fallthru
      _
    // Predicated region
    $region14: #{tpu_custom_call.1} parent=1 // pred_check
      _
    $region15: #{tpu_custom_call.1} parent=1 // pred_check_branch
      %45 = sbr.rel (0) target = $region17
    $region16: #{tpu_custom_call.1} parent=1 // pred_region
      %47 = vsyncadd [#allocation8], 0
      %s48 = sshll.u32 %s3, 4
      %s49 = int_to_ptr.hbm [resolvable:$true] %s48
      %s50 = sshll.u32 [#allocation9], 4
      %s51 = int_to_ptr.vmem [resolvable:$true] %s50
      %56 = dma.hbm_to_vmem [thread:$0]  %s49, 1024, %s51, [#allocation8], 64, 64, 4
    $region17: #{tpu_custom_call.1} parent=1 // pred_fallthru
      _
    // Predicated region
    $region18: #{tpu_custom_call.1} parent=1 // pred_check
      _
    $region19: #{tpu_custom_call.1} parent=1 // pred_check_branch
      %58 = sbr.rel (0) target = $region21
    $region20: #{tpu_custom_call.1} parent=1 // pred_region
      _
    $region21: #{tpu_custom_call.1} parent=1 // pred_fallthru
      _
    // Predicated region
    $region22: #{tpu_custom_call.1} parent=1 // pred_check
      _
    $region23: #{tpu_custom_call.1} parent=1 // pred_check_branch
      %60 = sbr.rel (0) target = $region25
    $region24: #{tpu_custom_call.1} parent=1 // pred_region
      %62 = vsyncadd [#allocation11], 0
      %s63 = sshll.u32 %s5, 4
      %s64 = int_to_ptr.hbm [resolvable:$true] %s63
      %s65 = sshll.u32 [#allocation10], 4
      %s66 = int_to_ptr.vmem [resolvable:$true] %s65
      %71 = dma.hbm_to_vmem [thread:$0]  %s64, 1024, %s66, [#allocation11], 64, 64, 4
    $region25: #{tpu_custom_call.1} parent=1 // pred_fallthru
      _
    // Predicated region
    $region26: #{tpu_custom_call.1} parent=1 // pred_check
      _
    $region27: #{tpu_custom_call.1} parent=1 // pred_check_branch
      %73 = sbr.rel (0) target = $region29
    $region28: #{tpu_custom_call.1} parent=1 // pred_region
      _
    $region29: #{tpu_custom_call.1} parent=1 // pred_fallthru
      _
    // Predicated region
    $region30: #{tpu_custom_call.1} parent=1 // pred_check
      _
    $region31: #{tpu_custom_call.1} parent=1 // pred_check_branch
      %75 = sbr.rel (0) target = $region33
    $region32: #{tpu_custom_call.1} parent=1 // pred_region
      %77 = vsyncadd [#allocation11], 0
      %s78 = sshll.u32 %s7, 4
      %s79 = int_to_ptr.hbm [resolvable:$true] %s78
      %s80 = sshll.u32 [#allocation12], 4
      %s81 = int_to_ptr.vmem [resolvable:$true] %s80
      %86 = dma.hbm_to_vmem [thread:$0]  %s79, 1024, %s81, [#allocation11], 64, 64, 4
    $region33: #{tpu_custom_call.1} parent=1 // pred_fallthru
      _
    // Predicated region
    $region34: #{tpu_custom_call.1} parent=1 // pred_check
      _
    $region35: #{tpu_custom_call.1} parent=1 // pred_check_branch
      %88 = sbr.rel (0) target = $region37
    $region36: #{tpu_custom_call.1} parent=1 // pred_region
      _
    $region37: #{tpu_custom_call.1} parent=1 // pred_fallthru
      _
    // Predicated region
    $region38: #{tpu_custom_call.1} parent=1 // pred_check
      _
    $region39: #{tpu_custom_call.1} parent=1 // pred_check_branch
      %90 = sbr.rel (0) target = $region41
    $region40: #{tpu_custom_call.1} parent=1 // pred_region
      %92 = dma.done [#allocation5], 128
    $region41: #{tpu_custom_call.1} parent=1 // pred_fallthru
      _
    // Predicated region
    $region42: #{tpu_custom_call.1} parent=1 // pred_check
      _
    $region43: #{tpu_custom_call.1} parent=1 // pred_check_branch
      %94 = sbr.rel (0) target = $region45
    $region44: #{tpu_custom_call.1} parent=1 // pred_region
      %96 = dma.done [#allocation8], 16
    $region45: #{tpu_custom_call.1} parent=1 // pred_fallthru
      _
    // Predicated region
    $region46: #{tpu_custom_call.1} parent=1 // pred_check
      _
    $region47: #{tpu_custom_call.1} parent=1 // pred_check_branch
      %98 = sbr.rel (0) target = $region49
    $region48: #{tpu_custom_call.1} parent=1 // pred_region
      %100 = dma.done [#allocation8], 1024
    $region49: #{tpu_custom_call.1} parent=1 // pred_fallthru
      _
    // Predicated region
    $region50: #{tpu_custom_call.1} parent=1 // pred_check
      _
    $region51: #{tpu_custom_call.1} parent=1 // pred_check_branch
      %102 = sbr.rel (0) target = $region53
    $region52: #{tpu_custom_call.1} parent=1 // pred_region
      %104 = dma.done [#allocation11], 1024
    $region53: #{tpu_custom_call.1} parent=1 // pred_fallthru
      _
    // Predicated region
    $region54: #{tpu_custom_call.1} parent=1 // pred_check
      _
    $region55: #{tpu_custom_call.1} parent=1 // pred_check_branch
      %106 = sbr.rel (0) target = $region57
    $region56: #{tpu_custom_call.1} parent=1 // pred_region
      %108 = dma.done [#allocation11], 1024
    $region57: #{tpu_custom_call.1} parent=1 // pred_fallthru
      _
    %p109 = scmp.eq.s32.totalorder 0, 0
    // Predicated region
    $region58: #{tpu_custom_call.1} parent=1 // pred_check
      %p110 = pneg %p109
    $region59: #{tpu_custom_call.1} parent=1 // pred_check_branch
      %112 = sbr.rel (%p110) target = $region61
    $region60: #{tpu_custom_call.1} parent=1 // pred_region
      %v113 = vld [vmem:[#allocation4] sm:$0xf]
      %v114 = vld [vmem:[#allocation4 + $0x4] sm:$0xf]
      %v115 = vunpack.c.l.bf16 %v113
      %v116 = vunpack.c.l.bf16 %v114
      %117 = vadd.xlane.f32.xlu0 %v115
      %v118 = vpop.xlane.xlu0 %117
      %119 = vadd.xlane.f32.xlu0 %v116
      %v120 = vpop.xlane.xlu0 %119
      %v121 = vmul.f32 %v118, 0.03125
      %v122 = vmul.f32 %v120, 0.03125
      %v123 = vlaneseq
      %v124 = vand.u32 %v123, 127
      %vm125 = vcmp.lt.s32.totalorder %v124, 32
      %v126 = vsub.f32 %v115, %v121
      %v127 = vsub.f32 %v116, %v122
      %v128 = vsel %vm125, %v126, 0.0
      %v129 = vsel %vm125, %v127, 0.0
      %v130 = vmul.f32 %v128, %v128
      %v131 = vmul.f32 %v129, %v129
      %132 = vadd.xlane.f32.xlu0 %v130
      %v133 = vpop.xlane.xlu0 %132
      %134 = vadd.xlane.f32.xlu0 %v131
      %v135 = vpop.xlane.xlu0 %134
      %v136 = vmul.f32 %v133, 0.03125
      %v137 = vmul.f32 %v135, 0.03125
      %v138 = vadd.f32 %v136, 1e-05
      %v139 = vadd.f32 %v137, 1e-05
      %v140 = vrsqrt.pop %v138
      %v141 = vmul.f32 %v140, %v138
      %v142 = vmul.f32 %v141, %v140
      %v143 = vmul.f32 0.5, %v142
      %v144 = vsub.f32 1.5, %v143
      %v145 = vmul.f32 %v140, %v144
      %vm146 = vweird.f32 %v138
      %vm147 = vweird.f32 %v140
      %vm148 = vmor %vm146, %vm147
      %v149 = vsel %vm148, %v140, %v145
      %v150 = vrsqrt.pop %v139
      %v151 = vmul.f32 %v150, %v139
      %v152 = vmul.f32 %v151, %v150
      %v153 = vmul.f32 0.5, %v152
      %v154 = vsub.f32 1.5, %v153
      %v155 = vmul.f32 %v150, %v154
      %vm156 = vweird.f32 %v139
      %vm157 = vweird.f32 %v150
      %vm158 = vmor %vm156, %vm157
      %v159 = vsel %vm158, %v150, %v155
      %v160 = vmul.f32 %v128, %v149
      %v161 = vmul.f32 %v129, %v159
      %v162 = vld [vmem:[#allocation7] sm:$0x1]
      %v164 = vperm.slane %v162, 0
      %v166 = vmul.f32 %v160, %v164
      %v167 = vmul.f32 %v161, %v164
      %v168 = vld [vmem:[%s2] sm:$0x1]
      %v170 = vperm.slane %v168, 0
      %v172 = vadd.f32 %v166, %v170
      %v173 = vadd.f32 %v167, %v170
      %v174 = vpack.c.bf16 %v172, %v172
      %v175 = vpack.c.bf16 %v173, %v173
      %176 = vst [vmem:[#allocation3] sm:$0xf] %v174
      %177 = vst [vmem:[#allocation3 + $0x4] sm:$0xf] %v175
      %178 = vst [vmem:[#allocation2] sm:$0xff] 0.0
      %179 = vst [vmem:[#allocation2 + $0x8] sm:$0xff] 0.0
    $region61: #{tpu_custom_call.1} parent=1 // pred_fallthru
      _
    %v180 = vld [vmem:[#allocation3] sm:$0xf]
    %v181 = vld [vmem:[#allocation3 + $0x4] sm:$0xf]
    %v182 = vld [vmem:[#allocation9] sm:$0xf]
    %v183 = vld [vmem:[#allocation9 + $0x4] sm:$0xf]
    %v184 = vld [vmem:[#allocation9 + $0x8] sm:$0xf]
    %v185 = vld [vmem:[#allocation9 + $0xc] sm:$0xf]
    %v186 = vld [vmem:[#allocation9 + $0x10] sm:$0xf]
    %v187 = vld [vmem:[#allocation9 + $0x14] sm:$0xf]
    %v188 = vld [vmem:[#allocation9 + $0x18] sm:$0xf]
    %v189 = vld [vmem:[#allocation9 + $0x1c] sm:$0xf]
    %v190 = vld [vmem:[#allocation9 + $0x20] sm:$0xf]
    %v191 = vld [vmem:[#allocation9 + $0x24] sm:$0xf]
    %v192 = vld [vmem:[#allocation9 + $0x28] sm:$0xf]
    %v193 = vld [vmem:[#allocation9 + $0x2c] sm:$0xf]
    %v194 = vld [vmem:[#allocation9 + $0x30] sm:$0xf]
    %v195 = vld [vmem:[#allocation9 + $0x34] sm:$0xf]
    %v196 = vld [vmem:[#allocation9 + $0x38] sm:$0xf]
    %v197 = vld [vmem:[#allocation9 + $0x3c] sm:$0xf]
    %v198 = vld [vmem:[%s4] sm:$0x1]
    %v200 = vperm.slane %v198, 0
    %v204 = vunpack.c.l.b16 %v180
    %v205 = vunpack.c.l.b16 %v181
    %v206 = vpack.c.b16 %v205, %v204
    %v224 = vunpack.c.l.b16 %v182
    %v225 = vunpack.c.l.b16 %v183
    %v226 = vunpack.c.l.b16 %v184
    %v227 = vunpack.c.l.b16 %v185
    %v228 = vunpack.c.l.b16 %v186
    %v229 = vunpack.c.l.b16 %v187
    %v230 = vunpack.c.l.b16 %v188
    %v231 = vunpack.c.l.b16 %v189
    %v232 = vunpack.c.l.b16 %v190
    %v233 = vunpack.c.l.b16 %v191
    %v234 = vunpack.c.l.b16 %v192
    %v235 = vunpack.c.l.b16 %v193
    %v236 = vunpack.c.l.b16 %v194
    %v237 = vunpack.c.l.b16 %v195
    %v238 = vunpack.c.l.b16 %v196
    %v239 = vunpack.c.l.b16 %v197
    %v240 = vpack.c.b16 %v225, %v224
    %v241 = vpack.c.b16 %v227, %v226
    %v242 = vpack.c.b16 %v229, %v228
    %v243 = vpack.c.b16 %v231, %v230
    %v244 = vpack.c.b16 %v233, %v232
    %v245 = vpack.c.b16 %v235, %v234
    %v246 = vpack.c.b16 %v237, %v236
    %v247 = vpack.c.b16 %v239, %v238
    %256 = vmatpush.bf16.msra.mxu0 %v247
    %257 = vmatpush.bf16.msra.mxu0 %v246
    %258 = vmatpush.bf16.msra.mxu0 %v245
    %259 = vmatpush.bf16.msra.mxu0 %v244
    %260 = vmatpush.bf16.msra.mxu0 %v243
    %261 = vmatpush.bf16.msra.mxu0 %v242
    %262 = vmatpush.bf16.msra.mxu0 %v241
    %263 = vmatpush.bf16.msra.mxu0 %v240
    %264 = vmatmul.bf16.gmra.mxu0 %v206
    %v265 = vpop.f32.mrf.mxu0
    %v266 = vadd.f32 %v200, %v265
    %v267 = vpop.f32.mrf.mxu0
    %v268 = vadd.f32 %v200, %v267
    %269 = vdwg.mxu0
    %v270 = vmul.f32 %v266, %v266
    %v271 = vmul.f32 %v268, %v268
    %v272 = vmul.f32 %v266, %v270
    %v273 = vmul.f32 %v268, %v271
    %v274 = vmul.f32 %v272, 0.044715
    %v275 = vmul.f32 %v273, 0.044715
    %v276 = vadd.f32 %v266, %v274
    %v277 = vadd.f32 %v268, %v275
    %v278 = vmul.f32 %v276, 0.7978846
    %v279 = vmul.f32 %v277, 0.7978846
    %v280 = vtanh.pop %v278
    %v281 = vtanh.pop %v279
    %v282 = vadd.f32 %v280, 1.0
    %v283 = vadd.f32 %v281, 1.0
    %v284 = vmul.f32 %v282, 0.5
    %v285 = vmul.f32 %v283, 0.5
    %v286 = vmul.f32 %v266, %v284
    %v287 = vmul.f32 %v268, %v285
    %v288 = vpack.c.bf16 %v287, %v286
    %v289 = vld [vmem:[#allocation2] sm:$0xff]
    %v290 = vld [vmem:[#allocation2 + $0x8] sm:$0xff]
    %v291 = vld [vmem:[#allocation10] sm:$0xf]
    %v292 = vld [vmem:[#allocation10 + $0x4] sm:$0xf]
    %v293 = vld [vmem:[#allocation10 + $0x8] sm:$0xf]
    %v294 = vld [vmem:[#allocation10 + $0xc] sm:$0xf]
    %v295 = vld [vmem:[#allocation10 + $0x10] sm:$0xf]
    %v296 = vld [vmem:[#allocation10 + $0x14] sm:$0xf]
    %v297 = vld [vmem:[#allocation10 + $0x18] sm:$0xf]
    %v298 = vld [vmem:[#allocation10 + $0x1c] sm:$0xf]
    %v299 = vld [vmem:[#allocation10 + $0x20] sm:$0xf]
    %v300 = vld [vmem:[#allocation10 + $0x24] sm:$0xf]
    %v301 = vld [vmem:[#allocation10 + $0x28] sm:$0xf]
    %v302 = vld [vmem:[#allocation10 + $0x2c] sm:$0xf]
    %v303 = vld [vmem:[#allocation10 + $0x30] sm:$0xf]
    %v304 = vld [vmem:[#allocation10 + $0x34] sm:$0xf]
    %v305 = vld [vmem:[#allocation10 + $0x38] sm:$0xf]
    %v306 = vld [vmem:[#allocation10 + $0x3c] sm:$0xf]
    %v323 = vunpack.c.l.b16 %v291
    %v324 = vunpack.c.l.b16 %v292
    %v325 = vunpack.c.l.b16 %v293
    %v326 = vunpack.c.l.b16 %v294
    %v327 = vunpack.c.l.b16 %v295
    %v328 = vunpack.c.l.b16 %v296
    %v329 = vunpack.c.l.b16 %v297
    %v330 = vunpack.c.l.b16 %v298
    %v331 = vunpack.c.l.b16 %v299
    %v332 = vunpack.c.l.b16 %v300
    %v333 = vunpack.c.l.b16 %v301
    %v334 = vunpack.c.l.b16 %v302
    %v335 = vunpack.c.l.b16 %v303
    %v336 = vunpack.c.l.b16 %v304
    %v337 = vunpack.c.l.b16 %v305
    %v338 = vunpack.c.l.b16 %v306
    %v339 = vpack.c.b16 %v324, %v323
    %v340 = vpack.c.b16 %v326, %v325
    %v341 = vpack.c.b16 %v328, %v327
    %v342 = vpack.c.b16 %v330, %v329
    %v343 = vpack.c.b16 %v332, %v331
    %v344 = vpack.c.b16 %v334, %v333
    %v345 = vpack.c.b16 %v336, %v335
    %v346 = vpack.c.b16 %v338, %v337
    %355 = vmatpush.bf16.msra.mxu0 %v346
    %356 = vmatpush.bf16.msra.mxu0 %v345
    %357 = vmatpush.bf16.msra.mxu0 %v344
    %358 = vmatpush.bf16.msra.mxu0 %v343
    %359 = vmatpush.bf16.msra.mxu0 %v342
    %360 = vmatpush.bf16.msra.mxu0 %v341
    %361 = vmatpush.bf16.msra.mxu0 %v340
    %362 = vmatpush.bf16.msra.mxu0 %v339
    %363 = vmatmul.bf16.gmra.mxu0 %v288
    %v364 = vpop.f32.mrf.mxu0
    %v365 = vadd.f32 0.0, %v364
    %v366 = vpop.f32.mrf.mxu0
    %v367 = vadd.f32 0.0, %v366
    %368 = vdwg.mxu0
    %v369 = vadd.f32 %v289, %v365
    %v370 = vadd.f32 %v290, %v367
    %371 = vst [vmem:[#allocation2] sm:$0xff] %v369
    %372 = vst [vmem:[#allocation2 + $0x8] sm:$0xff] %v370
    // Predicated region
    $region62: #{tpu_custom_call.1} parent=1 // pred_check
      %p373 = pneg %p109
    $region63: #{tpu_custom_call.1} parent=1 // pred_check_branch
      %375 = sbr.rel (%p373) target = $region65
    $region64: #{tpu_custom_call.1} parent=1 // pred_region
      %v376 = vld [vmem:[#allocation4] sm:$0xf]
      %v377 = vld [vmem:[#allocation4 + $0x4] sm:$0xf]
      %v378 = vunpack.c.l.bf16 %v376
      %v379 = vunpack.c.l.bf16 %v377
      %v380 = vld [vmem:[#allocation2] sm:$0xff]
      %v381 = vld [vmem:[#allocation2 + $0x8] sm:$0xff]
      %v382 = vadd.f32 %v378, %v380
      %v383 = vadd.f32 %v379, %v381
      %v384 = vld [vmem:[%s6] sm:$0x1]
      %v386 = vperm.slane %v384, 0
      %v388 = vadd.f32 %v382, %v386
      %v389 = vadd.f32 %v383, %v386
      %v390 = vpack.c.bf16 %v389, %v388
      %v391 = vld [vmem:[#allocation12] sm:$0xf]
      %v392 = vld [vmem:[#allocation12 + $0x4] sm:$0xf]
      %v393 = vld [vmem:[#allocation12 + $0x8] sm:$0xf]
      %v394 = vld [vmem:[#allocation12 + $0xc] sm:$0xf]
      %v395 = vld [vmem:[#allocation12 + $0x10] sm:$0xf]
      %v396 = vld [vmem:[#allocation12 + $0x14] sm:$0xf]
      %v397 = vld [vmem:[#allocation12 + $0x18] sm:$0xf]
      %v398 = vld [vmem:[#allocation12 + $0x1c] sm:$0xf]
      %v399 = vld [vmem:[#allocation12 + $0x20] sm:$0xf]
      %v400 = vld [vmem:[#allocation12 + $0x24] sm:$0xf]
      %v401 = vld [vmem:[#allocation12 + $0x28] sm:$0xf]
      %v402 = vld [vmem:[#allocation12 + $0x2c] sm:$0xf]
      %v403 = vld [vmem:[#allocation12 + $0x30] sm:$0xf]
      %v404 = vld [vmem:[#allocation12 + $0x34] sm:$0xf]
      %v405 = vld [vmem:[#allocation12 + $0x38] sm:$0xf]
      %v406 = vld [vmem:[#allocation12 + $0x3c] sm:$0xf]
      %v407 = vld [vmem:[%s8] sm:$0x1]
      %v409 = vperm.slane %v407, 0
      %v427 = vunpack.c.l.b16 %v391
      %v428 = vunpack.c.l.b16 %v392
      %v429 = vunpack.c.l.b16 %v393
      %v430 = vunpack.c.l.b16 %v394
      %v431 = vunpack.c.l.b16 %v395
      %v432 = vunpack.c.l.b16 %v396
      %v433 = vunpack.c.l.b16 %v397
      %v434 = vunpack.c.l.b16 %v398
      %v435 = vunpack.c.l.b16 %v399
      %v436 = vunpack.c.l.b16 %v400
      %v437 = vunpack.c.l.b16 %v401
      %v438 = vunpack.c.l.b16 %v402
      %v439 = vunpack.c.l.b16 %v403
      %v440 = vunpack.c.l.b16 %v404
      %v441 = vunpack.c.l.b16 %v405
      %v442 = vunpack.c.l.b16 %v406
      %v443 = vpack.c.b16 %v428, %v427
      %v444 = vpack.c.b16 %v430, %v429
      %v445 = vpack.c.b16 %v432, %v431
      %v446 = vpack.c.b16 %v434, %v433
      %v447 = vpack.c.b16 %v436, %v435
      %v448 = vpack.c.b16 %v438, %v437
      %v449 = vpack.c.b16 %v440, %v439
      %v450 = vpack.c.b16 %v442, %v441
      %459 = vmatpush.bf16.msra.mxu0 %v450
      %460 = vmatpush.bf16.msra.mxu0 %v449
      %461 = vmatpush.bf16.msra.mxu0 %v448
      %462 = vmatpush.bf16.msra.mxu0 %v447
      %463 = vmatpush.bf16.msra.mxu0 %v446
      %464 = vmatpush.bf16.msra.mxu0 %v445
      %465 = vmatpush.bf16.msra.mxu0 %v444
      %466 = vmatpush.bf16.msra.mxu0 %v443
      %467 = vmatmul.bf16.gmra.mxu0 %v390
      %v468 = vpop.f32.mrf.mxu0
      %v469 = vadd.f32 %v409, %v468
      %v470 = vpop.f32.mrf.mxu0
      %v471 = vadd.f32 %v409, %v470
      %472 = vdwg.mxu0
      %473 = vst [vmem:[#allocation13] sm:$0xff] %v469
      %474 = vst [vmem:[#allocation13 + $0x8] sm:$0xff] %v471
    $region65: #{tpu_custom_call.1} parent=1 // pred_fallthru
      _
    // Predicated region
    $region66: #{tpu_custom_call.1} parent=1 // pred_check
      _
    $region67: #{tpu_custom_call.1} parent=1 // pred_check_branch
      %476 = sbr.rel (0) target = $region69
    $region68: #{tpu_custom_call.1} parent=1 // pred_region
      %478 = vsyncadd [#allocation6], 0
      %s479 = sshll.u32 [#allocation13], 4
      %s480 = int_to_ptr.vmem [resolvable:$true] %s479
      %s481 = sshll.u32 %s9, 4
      %s482 = int_to_ptr.hbm [resolvable:$true] %s481
      %487 = dma.vmem_to_hbm [thread:$0]  %s480, 256, %s482, [#allocation6], 128, 128, 8
    $region69: #{tpu_custom_call.1} parent=1 // pred_fallthru
      _
    // Predicated region
    $region70: #{tpu_custom_call.1} parent=1 // pred_check
      _
    $region71: #{tpu_custom_call.1} parent=1 // pred_check_branch
      %489 = sbr.rel (0) target = $region73
    $region72: #{tpu_custom_call.1} parent=1 // pred_region
      %491 = dma.done [#allocation6], 256
    $region73: #{tpu_custom_call.1} parent=1 // pred_fallthru
      _
    %492 = vsyncpa [#allocation5], 1
    %493 = vsyncpa [#allocation8], 1
    %494 = vsyncpa [#allocation11], 1
    %495 = vsyncpa [#allocation6], 1

</llo_original>
